<compile_context>
chip_gen: v6e
topology: v6e:2x2x1
jax: 0.10.0
libtpu: 0.0.40
codegen_flags: <defaults>
</compile_context>

<pallas_src>
import jax
import jax.numpy as jnp
from jax.experimental import pallas as pl
from jax.experimental.pallas import tpu as pltpu


def _time_embedding_kernel(x_ref, w1_ref, b1_ref, w2_ref, b2_ref, o_ref):
    # ---- linear1 + SiLU on the full (b_pad, hidden) activation ------------
    # Recomputed per output tile j: with a 1-5 step grid and B<=8 this is
    # noise on the MXU, and it keeps the grid axis fully "parallel" (safe for
    # v7x megacore sharding -- no cross-step scratch dependence).
    x = x_ref[...]
    w1 = w1_ref[...]
    h = jax.lax.dot_general(                      # (B,n)·(hidden,n)^T -> (B,hidden)
        x.astype(w1.dtype), w1,
        dimension_numbers=(((1,), (1,)), ((), ())),
        preferred_element_type=jnp.float32)
    h = h + b1_ref[...]                           # f32 bias
    h = h * jax.nn.sigmoid(h)                     # SiLU in f32 (EUP)

    # ---- linear2 output tile: h · W2_rowblock^T ----------------------------
    w2 = w2_ref[...]                              # (tn, hidden), (out,in) layout
    y = jax.lax.dot_general(                      # (B,hidden)·(tn,hidden)^T -> (B,tn)
        h.astype(w2.dtype), w2,
        dimension_numbers=(((1,), (1,)), ((), ())),
        preferred_element_type=jnp.float32)
    o_ref[...] = (y + b2_ref[...]).astype(o_ref.dtype)


def _pick_tn(hidden, resident_bytes, per_col_bytes, budget_bytes):
    """Largest multiple-of-128 divisor of `hidden` fitting the VMEM budget.

    Prefers a proper divisor (>=2 grid steps) so the W2 stream pipelines with
    compute and splits across v7x TensorCores; falls back to the full extent
    when hidden has no 128-multiple divisor (full-extent blocks are always
    legal).
    """
    divisors = [d for d in range(128, hidden + 1, 128) if hidden % d == 0]
    if not divisors:
        return hidden
    proper = [d for d in divisors if d < hidden] or divisors
    fitting = [d for d in proper if resident_bytes + d * per_col_bytes <= budget_bytes]
    if fitting:
        return max(fitting)
    return divisors[0]


def time_embedding(x, w1, b1, w2, b2, *, weight_dtype=jnp.bfloat16, tn=None,
                   vmem_budget_bytes=32 * 1024 * 1024):
    """TimeEmbedding forward via a single fused Pallas kernel.

    x:  (B, n_embed)
    w1: (4n, n)   b1: (4n,)    (PyTorch nn.Linear layout)
    w2: (4n, 4n)  b2: (4n,)
    weight_dtype: shipping dtype for W1/W2 (bf16 default; None = keep as-is).
                  Accumulation, SiLU and both biases stay f32.
    """
    B, n = x.shape
    hidden = 4 * n
    assert w1.shape == (hidden, n) and b1.shape == (hidden,)
    assert w2.shape == (hidden, hidden) and b2.shape == (hidden,)

    out_dtype = x.dtype

    # Weights optionally shipped narrow; biases always f32 (free accuracy).
    if weight_dtype is not None:
        w1 = w1.astype(weight_dtype)
        w2 = w2.astype(weight_dtype)
    b1_2d = b1.astype(jnp.float32).reshape(1, hidden)
    b2_2d = b2.astype(jnp.float32).reshape(1, hidden)

    # Pad batch to one sublane tile (8 rows) -> unmasked full-tile stores.
    b_pad = max(8, -(-B // 8) * 8)
    if b_pad != B:
        x = jnp.pad(x, ((0, b_pad - B), (0, 0)))

    x_bytes = jnp.dtype(x.dtype).itemsize
    w_bytes = jnp.dtype(w2.dtype).itemsize
    o_bytes = jnp.dtype(out_dtype).itemsize

    # VMEM footprint (default pipeline double-buffers every operand):
    #   resident  = x + W1 + b1 (constant index maps, DMA'd once)
    #   per_col   = streamed bytes per output column (W2 row block, b2, out)
    resident = 2 * (b_pad * n * x_bytes + hidden * n * w_bytes + hidden * 4)
    per_col = 2 * (hidden * w_bytes + 4 + b_pad * o_bytes)

    if tn is None:
        tn = _pick_tn(hidden, resident, per_col, vmem_budget_bytes)
    assert hidden % tn == 0
    grid = (hidden // tn,)

    footprint = resident + tn * per_col
    vmem_limit = int(min(max(2 * footprint, 16 * 1024 * 1024),
                         100 * 1024 * 1024))

    cost = pl.CostEstimate(
        flops=2 * b_pad * n * hidden * grid[0] + 2 * b_pad * hidden * hidden,
        transcendentals=b_pad * hidden * grid[0],
        bytes_accessed=(b_pad * n * x_bytes
                        + (hidden * n + hidden * hidden) * w_bytes
                        + 2 * hidden * 4
                        + b_pad * hidden * o_bytes),
    )

    out = pl.pallas_call(
        _time_embedding_kernel,
        out_shape=jax.ShapeDtypeStruct((b_pad, hidden), out_dtype),
        grid=grid,
        in_specs=[
            pl.BlockSpec((b_pad, n), lambda j: (0, 0)),    # x:  resident
            pl.BlockSpec((hidden, n), lambda j: (0, 0)),   # W1: resident
            pl.BlockSpec((1, hidden), lambda j: (0, 0)),   # b1: resident (f32)
            pl.BlockSpec((tn, hidden), lambda j: (j, 0)),  # W2: streamed row blocks
            pl.BlockSpec((1, tn), lambda j: (0, j)),       # b2: per-output tile (f32)
        ],
        out_specs=pl.BlockSpec((b_pad, tn), lambda j: (0, j)),
        compiler_params=pltpu.CompilerParams(
            dimension_semantics=("parallel",),
            vmem_limit_bytes=vmem_limit,
        ),
        cost_estimate=cost,
    )(x, w1, b1_2d, w2, b2_2d)

    return out[:B] if b_pad != B else out


def _reference(x, w1, b1, w2, b2):
    h = x @ w1.T + b1
    h = h * jax.nn.sigmoid(h)
    return h @ w2.T + b2


if __name__ == "__main__":
    # ---- case 1: f32 weights, single-tile grid (tight tolerance) ----------
    B, n_embed = 2, 32
    hidden = 4 * n_embed
    kx, k1, k2, k3, k4 = jax.random.split(jax.random.PRNGKey(0), 5)
    x = jax.random.normal(kx, (B, n_embed), dtype=jnp.float32)
    w1 = jax.random.normal(k1, (hidden, n_embed), dtype=jnp.float32) * 0.02
    b1 = jax.random.normal(k2, (hidden,), dtype=jnp.float32) * 0.02
    w2 = jax.random.normal(k3, (hidden, hidden), dtype=jnp.float32) * 0.02
    b2 = jax.random.normal(k4, (hidden,), dtype=jnp.float32) * 0.02

    out = jax.block_until_ready(
        time_embedding(x, w1, b1, w2, b2, weight_dtype=jnp.float32))
    ref = _reference(x, w1, b1, w2, b2)
    assert out.shape == (B, hidden)
    assert jnp.allclose(out, ref, atol=1e-4, rtol=1e-4), \
        f"f32 mismatch: max abs err {jnp.max(jnp.abs(out - ref))}"

    # ---- case 2: default bf16 weights, multi-step (2-tile) grid ------------
    B2, n2 = 2, 128                        # hidden = 512 -> tn = 256, grid=(2,)
    h2 = 4 * n2
    kx, k1, k2, k3, k4 = jax.random.split(jax.random.PRNGKey(1), 5)
    x2 = jax.random.normal(kx, (B2, n2), dtype=jnp.float32)
    w1b = jax.random.normal(k1, (h2, n2), dtype=jnp.float32) * 0.02
    b1b = jax.random.normal(k2, (h2,), dtype=jnp.float32) * 0.02
    w2b = jax.random.normal(k3, (h2, h2), dtype=jnp.float32) * 0.02
    b2b = jax.random.normal(k4, (h2,), dtype=jnp.float32) * 0.02

    out2 = jax.block_until_ready(time_embedding(x2, w1b, b1b, w2b, b2b))
    ref2 = _reference(x2, w1b, b1b, w2b, b2b)
    assert out2.shape == (B2, h2)
    # bf16 weight shipping (f32 biases + f32 accumulation) -> loose tolerance.
    assert jnp.allclose(out2, ref2, atol=2e-2, rtol=5e-2), \
        f"bf16 mismatch: max abs err {jnp.max(jnp.abs(out2 - ref2))}"

    print("KERNEL_OK")
</pallas_src>

<mosaic_0001>
module attributes {stable_mosaic.version = 11 : i64} {
  func.func @_time_embedding_kernel(%arg0: i32, %arg1: memref<8x32xf32, #tpu.memory_space<vmem>>, %arg2: memref<128x32xf32, #tpu.memory_space<vmem>>, %arg3: memref<1x128xf32, #tpu.memory_space<vmem>>, %arg4: memref<128x128xf32, #tpu.memory_space<vmem>>, %arg5: memref<1x128xf32, #tpu.memory_space<vmem>>, %arg6: memref<8x128xf32, #tpu.memory_space<vmem>>) attributes {dimension_semantics = [#tpu.dimension_semantics<parallel>], iteration_bounds = array<i64: 1>, scalar_prefetch = 0 : i64, scratch_operands = 0 : i64, tpu.core_type = #tpu.core_type<tc>, window_params = [{pipeline_mode = #tpu.pipeline_mode<synchronous>, transform_indices = @transform_0, window_bounds = array<i64: 8, 32>}, {pipeline_mode = #tpu.pipeline_mode<synchronous>, transform_indices = @transform_1, window_bounds = array<i64: 128, 32>}, {pipeline_mode = #tpu.pipeline_mode<synchronous>, transform_indices = @transform_2, window_bounds = array<i64: 1, 128>}, {transform_indices = @transform_3, window_bounds = array<i64: 128, 128>}, {transform_indices = @transform_4, window_bounds = array<i64: 1, 128>}, {transform_indices = @transform_5, window_bounds = array<i64: 8, 128>}]} {
    %c0 = arith.constant 0 : index
    %c0_0 = arith.constant 0 : index
    %0 = vector.load %arg1[%c0, %c0_0] : memref<8x32xf32, #tpu.memory_space<vmem>>, vector<8x32xf32>
    %c0_1 = arith.constant 0 : index
    %c0_2 = arith.constant 0 : index
    %1 = vector.load %arg2[%c0_1, %c0_2] : memref<128x32xf32, #tpu.memory_space<vmem>>, vector<128x32xf32>
    %cst = arith.constant dense<0.000000e+00> : vector<8x128xf32>
    %2 = tpu.matmul %0, %1, %cst {dimension_numbers = #tpu.dot_dimension_numbers<[1], [1], [0], [0], [0, 0, 1, 0], [], []>} : vector<8x32xf32>, vector<128x32xf32>, vector<8x128xf32> -> vector<8x128xf32>
    %c0_3 = arith.constant 0 : index
    %c0_4 = arith.constant 0 : index
    %3 = vector.load %arg3[%c0_3, %c0_4] : memref<1x128xf32, #tpu.memory_space<vmem>>, vector<1x128xf32>
    %4 = vector.broadcast %3 : vector<1x128xf32> to vector<8x128xf32>
    %5 = arith.addf %2, %4 : vector<8x128xf32>
    %6 = arith.negf %5 : vector<8x128xf32>
    %7 = math.exp %6 : vector<8x128xf32>
    %cst_5 = arith.constant 1.000000e+00 : f32
    %8 = vector.broadcast %cst_5 : f32 to vector<8x128xf32>
    %9 = arith.addf %8, %7 : vector<8x128xf32>
    %10 = arith.divf %8, %9 : vector<8x128xf32>
    %11 = arith.mulf %5, %10 : vector<8x128xf32>
    %c0_6 = arith.constant 0 : index
    %c0_7 = arith.constant 0 : index
    %12 = vector.load %arg4[%c0_6, %c0_7] : memref<128x128xf32, #tpu.memory_space<vmem>>, vector<128x128xf32>
    %cst_8 = arith.constant dense<0.000000e+00> : vector<8x128xf32>
    %13 = tpu.matmul %11, %12, %cst_8 {dimension_numbers = #tpu.dot_dimension_numbers<[1], [1], [0], [0], [0, 0, 1, 0], [], []>} : vector<8x128xf32>, vector<128x128xf32>, vector<8x128xf32> -> vector<8x128xf32>
    %c0_9 = arith.constant 0 : index
    %c0_10 = arith.constant 0 : index
    %14 = vector.load %arg5[%c0_9, %c0_10] : memref<1x128xf32, #tpu.memory_space<vmem>>, vector<1x128xf32>
    %15 = vector.broadcast %14 : vector<1x128xf32> to vector<8x128xf32>
    %16 = arith.addf %13, %15 : vector<8x128xf32>
    %c0_11 = arith.constant 0 : index
    %c0_12 = arith.constant 0 : index
    %17 = vector.load %arg6[%c0_11, %c0_12] : memref<8x128xf32, #tpu.memory_space<vmem>>, vector<8x128xf32>
    tpu.vector_store %arg6[%c0_11, %c0_12], %16 {strides = array<i32>} : memref<8x128xf32, #tpu.memory_space<vmem>>, vector<8x128xf32>,
    return
  }
  func.func @transform_0(%arg0: i32) -> (i32, i32) {
    %c0_i32 = arith.constant 0 : i32
    %c0_i32_0 = arith.constant 0 : i32
    %c0_i32_1 = arith.constant 0 : i32
    return %c0_i32, %c0_i32_0 : i32, i32
  }
  func.func @transform_1(%arg0: i32) -> (i32, i32) {
    %c0_i32 = arith.constant 0 : i32
    %c0_i32_0 = arith.constant 0 : i32
    %c0_i32_1 = arith.constant 0 : i32
    return %c0_i32, %c0_i32_0 : i32, i32
  }
  func.func @transform_2(%arg0: i32) -> (i32, i32) {
    %c0_i32 = arith.constant 0 : i32
    %c0_i32_0 = arith.constant 0 : i32
    %c0_i32_1 = arith.constant 0 : i32
    return %c0_i32, %c0_i32_0 : i32, i32
  }
  func.func @transform_3(%arg0: i32) -> (i32, i32) {
    %c0_i32 = arith.constant 0 : i32
    %c0_i32_0 = arith.constant 0 : i32
    return %arg0, %c0_i32 : i32, i32
  }
  func.func @transform_4(%arg0: i32) -> (i32, i32) {
    %c0_i32 = arith.constant 0 : i32
    %c0_i32_0 = arith.constant 0 : i32
    return %c0_i32, %arg0 : i32, i32
  }
  func.func @transform_5(%arg0: i32) -> (i32, i32) {
    %c0_i32 = arith.constant 0 : i32
    %c0_i32_0 = arith.constant 0 : i32
    return %c0_i32, %arg0 : i32, i32
  }
}

</mosaic_0001>

<llo_original>
// kernel: tpu_custom_call.1
$region0: #{tpu_custom_call.1}
  #allocation0 [shape = 'u32[]', space=smem, size = 0x4, offset = 0x4, fixed_abs, tag = 'smem constant byte address 0x4 - core index']
  #allocation1 [shape = 'u32[144,128]{1,0:T(1,128)}', space=vmem, size = 0x12000, scoped, tag = 'internal scratch']
  %s0 = inlined_call_operand.vmem [shape: f32[8,32], index: 0, kind: input, shape index: {}]
  %s1 = inlined_call_operand.vmem [shape: f32[128,32], index: 1, kind: input, shape index: {}]
  %s2 = inlined_call_operand.vmem [shape: f32[1,128], index: 2, kind: input, shape index: {}]
  %s3 = inlined_call_operand.vmem [shape: f32[128,128], index: 3, kind: input, shape index: {}]
  %s4 = inlined_call_operand.vmem [shape: f32[1,128], index: 4, kind: input, shape index: {}]
  %s5 = inlined_call_operand.hbm [shape: f32[8,128], index: 5, kind: output, shape index: {}]
  %s6 = sld [smem:[#allocation0]]
  $region30: #{tpu_custom_call.1} parent=0
    _
  %s8 = ssub.s32 1, %s6
  %s9 = scalar_select 0, %s8, %s6
  $region1: #{tpu_custom_call.1} parent=0
    #allocation2 [shape = 'u8[4096]{0}', space=vmem, size = 0x1000, scoped, tag = 'output window, operand 0, single buffered']
    #allocation3 [shape = 's32[1]{0}', space=sflag, size = 0x4, scoped, tag = 'scoped memory for tpu_custom_call.1']
    %10 = vsyncpa [#allocation3], 0
    // Predicated region
    $region2: #{tpu_custom_call.1} parent=1 // pred_check
      _
    $region3: #{tpu_custom_call.1} parent=1 // pred_check_branch
      %12 = sbr.rel (0) target = $region5
    $region4: #{tpu_custom_call.1} parent=1 // pred_region
      _
    $region5: #{tpu_custom_call.1} parent=1 // pred_fallthru
      _
    // Predicated region
    $region6: #{tpu_custom_call.1} parent=1 // pred_check
      _
    $region7: #{tpu_custom_call.1} parent=1 // pred_check_branch
      %14 = sbr.rel (0) target = $region9
    $region8: #{tpu_custom_call.1} parent=1 // pred_region
      _
    $region9: #{tpu_custom_call.1} parent=1 // pred_fallthru
      _
    // Predicated region
    $region10: #{tpu_custom_call.1} parent=1 // pred_check
      _
    $region11: #{tpu_custom_call.1} parent=1 // pred_check_branch
      %16 = sbr.rel (0) target = $region13
    $region12: #{tpu_custom_call.1} parent=1 // pred_region
      _
    $region13: #{tpu_custom_call.1} parent=1 // pred_fallthru
      _
    // Predicated region
    $region14: #{tpu_custom_call.1} parent=1 // pred_check
      _
    $region15: #{tpu_custom_call.1} parent=1 // pred_check_branch
      %18 = sbr.rel (0) target = $region17
    $region16: #{tpu_custom_call.1} parent=1 // pred_region
      _
    $region17: #{tpu_custom_call.1} parent=1 // pred_fallthru
      _
    // Predicated region
    $region18: #{tpu_custom_call.1} parent=1 // pred_check
      _
    $region19: #{tpu_custom_call.1} parent=1 // pred_check_branch
      %20 = sbr.rel (0) target = $region21
    $region20: #{tpu_custom_call.1} parent=1 // pred_region
      _
    $region21: #{tpu_custom_call.1} parent=1 // pred_fallthru
      _
    %v21 = vld [vmem:[%s0] sm:$0xff]
    %v22 = vld [vmem:[%s1] sm:$0xff]
    %v23 = vld [vmem:[%s1 + $0x8] sm:$0xff]
    %v24 = vld [vmem:[%s1 + $0x10] sm:$0xff]
    %v25 = vld [vmem:[%s1 + $0x18] sm:$0xff]
    %v26 = vld [vmem:[%s1 + $0x20] sm:$0xff]
    %v27 = vld [vmem:[%s1 + $0x28] sm:$0xff]
    %v28 = vld [vmem:[%s1 + $0x30] sm:$0xff]
    %v29 = vld [vmem:[%s1 + $0x38] sm:$0xff]
    %v30 = vld [vmem:[%s1 + $0x40] sm:$0xff]
    %v31 = vld [vmem:[%s1 + $0x48] sm:$0xff]
    %v32 = vld [vmem:[%s1 + $0x50] sm:$0xff]
    %v33 = vld [vmem:[%s1 + $0x58] sm:$0xff]
    %v34 = vld [vmem:[%s1 + $0x60] sm:$0xff]
    %v35 = vld [vmem:[%s1 + $0x68] sm:$0xff]
    %v36 = vld [vmem:[%s1 + $0x70] sm:$0xff]
    %v37 = vld [vmem:[%s1 + $0x78] sm:$0xff]
    %v38 = vld [vmem:[%s2] sm:$0x1]
    %v40 = vlaneseq
    %v41 = vshrl.u32 %v40, 7
    %v42 = vsub.s32 0, %v41
    %v43 = vrot.slane %v38, %v42
    %vm45 = vcmask 261120
    %v47 = vsel %vm45, %v21, 0
    %v50 = vsel %vm45, %v22, 0
    %v53 = vsel %vm45, %v23, 0
    %v56 = vsel %vm45, %v24, 0
    %v59 = vsel %vm45, %v25, 0
    %v62 = vsel %vm45, %v26, 0
    %v65 = vsel %vm45, %v27, 0
    %v68 = vsel %vm45, %v28, 0
    %v71 = vsel %vm45, %v29, 0
    %v74 = vsel %vm45, %v30, 0
    %v77 = vsel %vm45, %v31, 0
    %v80 = vsel %vm45, %v32, 0
    %v83 = vsel %vm45, %v33, 0
    %v86 = vsel %vm45, %v34, 0
    %v89 = vsel %vm45, %v35, 0
    %v92 = vsel %vm45, %v36, 0
    %v95 = vsel %vm45, %v37, 0
    %97 = vmatprep.subr.mxu0 0.0
    %98 = vmatpush1.xpose.msra.mxu0 %v95
    %99 = vmatprep.subr.mxu0 0.0
    %100 = vmatpush1.xpose.msra.mxu0 %v92
    %101 = vmatprep.subr.mxu0 0.0
    %102 = vmatpush1.xpose.msra.mxu0 %v89
    %103 = vmatprep.subr.mxu0 0.0
    %104 = vmatpush1.xpose.msra.mxu0 %v86
    %105 = vmatprep.subr.mxu0 0.0
    %106 = vmatpush1.xpose.msra.mxu0 %v83
    %107 = vmatprep.subr.mxu0 0.0
    %108 = vmatpush1.xpose.msra.mxu0 %v80
    %109 = vmatprep.subr.mxu0 0.0
    %110 = vmatpush1.xpose.msra.mxu0 %v77
    %111 = vmatprep.subr.mxu0 0.0
    %112 = vmatpush1.xpose.msra.mxu0 %v74
    %113 = vmatprep.subr.mxu0 0.0
    %114 = vmatpush1.xpose.msra.mxu0 %v71
    %115 = vmatprep.subr.mxu0 0.0
    %116 = vmatpush1.xpose.msra.mxu0 %v68
    %117 = vmatprep.subr.mxu0 0.0
    %118 = vmatpush1.xpose.msra.mxu0 %v65
    %119 = vmatprep.subr.mxu0 0.0
    %120 = vmatpush1.xpose.msra.mxu0 %v62
    %121 = vmatprep.subr.mxu0 0.0
    %122 = vmatpush1.xpose.msra.mxu0 %v59
    %123 = vmatprep.subr.mxu0 0.0
    %124 = vmatpush1.xpose.msra.mxu0 %v56
    %125 = vmatprep.subr.mxu0 0.0
    %126 = vmatpush1.xpose.msra.mxu0 %v53
    %127 = vmatprep.subr.mxu0 0.0
    %128 = vmatpush1.xpose.msra.mxu0 %v50
    %129 = vmatprep.subr.mxu0 0.0
    %130 = vmatpush2.xpose.msra.mxu0 0.0
    %131 = vmatprep.subr.mxu0 0.0
    %132 = vmatpush2.xpose.msra.mxu0 0.0
    %133 = vmatprep.subr.mxu0 0.0
    %134 = vmatpush2.xpose.msra.mxu0 0.0
    %135 = vmatprep.subr.mxu0 0.0
    %136 = vmatpush2.xpose.msra.mxu0 0.0
    %137 = vmatprep.subr.mxu0 0.0
    %138 = vmatpush2.xpose.msra.mxu0 0.0
    %139 = vmatprep.subr.mxu0 0.0
    %140 = vmatpush2.xpose.msra.mxu0 0.0
    %141 = vmatprep.subr.mxu0 0.0
    %142 = vmatpush2.xpose.msra.mxu0 0.0
    %143 = vmatprep.subr.mxu0 0.0
    %144 = vmatpush2.xpose.msra.mxu0 0.0
    %145 = vmatprep.subr.mxu0 0.0
    %146 = vmatpush2.xpose.msra.mxu0 0.0
    %147 = vmatprep.subr.mxu0 0.0
    %148 = vmatpush2.xpose.msra.mxu0 0.0
    %149 = vmatprep.subr.mxu0 0.0
    %150 = vmatpush2.xpose.msra.mxu0 0.0
    %151 = vmatprep.subr.mxu0 0.0
    %152 = vmatpush2.xpose.msra.mxu0 0.0
    %153 = vmatprep.subr.mxu0 0.0
    %154 = vmatpush2.xpose.msra.mxu0 0.0
    %155 = vmatprep.subr.mxu0 0.0
    %156 = vmatpush2.xpose.msra.mxu0 0.0
    %157 = vmatprep.subr.mxu0 0.0
    %158 = vmatpush2.xpose.msra.mxu0 0.0
    %159 = vmatprep.subr.mxu0 0.0
    %160 = vmatpush2.xpose.msra.mxu0 0.0
    %161 = vmatprep.mubr.f32.mxu0 0.0
    %162 = vmatmul.mubr.f32.gmra.mxu0 %v47
    %v163 = vpop.f32.mrf.mxu0
    %v164 = vadd.f32 %v43, %v163
    %v165 = vpop.f32.mrf.mxu0
    %166 = vdwg.mxu0
    %v167 = vxor.u32 %v164, 2147483648
    %v168 = vmul.f32 %v167, 1.442695
    %v169 = vpow.pop %v168
    %v170 = vadd.f32 %v169, 1.0
    %v171 = vrcp.pop %v170
    %v172 = vmul.f32 1.0, %v171
    %v173 = vmul.f32 %v164, %v172
    %v174 = vld [vmem:[%s3] sm:$0xff]
    %v175 = vld [vmem:[%s3 + $0x8] sm:$0xff]
    %v176 = vld [vmem:[%s3 + $0x10] sm:$0xff]
    %v177 = vld [vmem:[%s3 + $0x18] sm:$0xff]
    %v178 = vld [vmem:[%s3 + $0x20] sm:$0xff]
    %v179 = vld [vmem:[%s3 + $0x28] sm:$0xff]
    %v180 = vld [vmem:[%s3 + $0x30] sm:$0xff]
    %v181 = vld [vmem:[%s3 + $0x38] sm:$0xff]
    %v182 = vld [vmem:[%s3 + $0x40] sm:$0xff]
    %v183 = vld [vmem:[%s3 + $0x48] sm:$0xff]
    %v184 = vld [vmem:[%s3 + $0x50] sm:$0xff]
    %v185 = vld [vmem:[%s3 + $0x58] sm:$0xff]
    %v186 = vld [vmem:[%s3 + $0x60] sm:$0xff]
    %v187 = vld [vmem:[%s3 + $0x68] sm:$0xff]
    %v188 = vld [vmem:[%s3 + $0x70] sm:$0xff]
    %v189 = vld [vmem:[%s3 + $0x78] sm:$0xff]
    %v190 = vld [vmem:[%s4] sm:$0x1]
    %v192 = vlaneseq
    %v193 = vshrl.u32 %v192, 7
    %v194 = vsub.s32 0, %v193
    %v195 = vrot.slane %v190, %v194
    %197 = vmatprep.subr.mxu0 0.0
    %198 = vmatpush1.xpose.msra.mxu0 %v189
    %199 = vmatprep.subr.mxu0 0.0
    %200 = vmatpush1.xpose.msra.mxu0 %v188
    %201 = vmatprep.subr.mxu0 0.0
    %202 = vmatpush1.xpose.msra.mxu0 %v187
    %203 = vmatprep.subr.mxu0 0.0
    %204 = vmatpush1.xpose.msra.mxu0 %v186
    %205 = vmatprep.subr.mxu0 0.0
    %206 = vmatpush1.xpose.msra.mxu0 %v185
    %207 = vmatprep.subr.mxu0 0.0
    %208 = vmatpush1.xpose.msra.mxu0 %v184
    %209 = vmatprep.subr.mxu0 0.0
    %210 = vmatpush1.xpose.msra.mxu0 %v183
    %211 = vmatprep.subr.mxu0 0.0
    %212 = vmatpush1.xpose.msra.mxu0 %v182
    %213 = vmatprep.subr.mxu0 0.0
    %214 = vmatpush1.xpose.msra.mxu0 %v181
    %215 = vmatprep.subr.mxu0 0.0
    %216 = vmatpush1.xpose.msra.mxu0 %v180
    %217 = vmatprep.subr.mxu0 0.0
    %218 = vmatpush1.xpose.msra.mxu0 %v179
    %219 = vmatprep.subr.mxu0 0.0
    %220 = vmatpush1.xpose.msra.mxu0 %v178
    %221 = vmatprep.subr.mxu0 0.0
    %222 = vmatpush1.xpose.msra.mxu0 %v177
    %223 = vmatprep.subr.mxu0 0.0
    %224 = vmatpush1.xpose.msra.mxu0 %v176
    %225 = vmatprep.subr.mxu0 0.0
    %226 = vmatpush1.xpose.msra.mxu0 %v175
    %227 = vmatprep.subr.mxu0 0.0
    %228 = vmatpush1.xpose.msra.mxu0 %v174
    %229 = vmatprep.subr.mxu0 0.0
    %230 = vmatpush2.xpose.msra.mxu0 0.0
    %231 = vmatprep.subr.mxu0 0.0
    %232 = vmatpush2.xpose.msra.mxu0 0.0
    %233 = vmatprep.subr.mxu0 0.0
    %234 = vmatpush2.xpose.msra.mxu0 0.0
    %235 = vmatprep.subr.mxu0 0.0
    %236 = vmatpush2.xpose.msra.mxu0 0.0
    %237 = vmatprep.subr.mxu0 0.0
    %238 = vmatpush2.xpose.msra.mxu0 0.0
    %239 = vmatprep.subr.mxu0 0.0
    %240 = vmatpush2.xpose.msra.mxu0 0.0
    %241 = vmatprep.subr.mxu0 0.0
    %242 = vmatpush2.xpose.msra.mxu0 0.0
    %243 = vmatprep.subr.mxu0 0.0
    %244 = vmatpush2.xpose.msra.mxu0 0.0
    %245 = vmatprep.subr.mxu0 0.0
    %246 = vmatpush2.xpose.msra.mxu0 0.0
    %247 = vmatprep.subr.mxu0 0.0
    %248 = vmatpush2.xpose.msra.mxu0 0.0
    %249 = vmatprep.subr.mxu0 0.0
    %250 = vmatpush2.xpose.msra.mxu0 0.0
    %251 = vmatprep.subr.mxu0 0.0
    %252 = vmatpush2.xpose.msra.mxu0 0.0
    %253 = vmatprep.subr.mxu0 0.0
    %254 = vmatpush2.xpose.msra.mxu0 0.0
    %255 = vmatprep.subr.mxu0 0.0
    %256 = vmatpush2.xpose.msra.mxu0 0.0
    %257 = vmatprep.subr.mxu0 0.0
    %258 = vmatpush2.xpose.msra.mxu0 0.0
    %259 = vmatprep.subr.mxu0 0.0
    %260 = vmatpush2.xpose.msra.mxu0 0.0
    %261 = vmatprep.mubr.f32.mxu0 0.0
    %262 = vmatmul.mubr.f32.gmra.mxu0 %v173
    %v263 = vpop.f32.mrf.mxu0
    %v264 = vadd.f32 %v195, %v263
    %v265 = vpop.f32.mrf.mxu0
    %266 = vdwg.mxu0
    %267 = vst [vmem:[#allocation2] sm:$0xff] %v264
    // Predicated region
    $region22: #{tpu_custom_call.1} parent=1 // pred_check
      _
    $region23: #{tpu_custom_call.1} parent=1 // pred_check_branch
      %269 = sbr.rel (0) target = $region25
    $region24: #{tpu_custom_call.1} parent=1 // pred_region
      %s271 = ssub.s32 128, 128
      %272 = vsyncadd [#allocation3], %s271
      %s274 = sshll.u32 [#allocation2], 4
      %s275 = int_to_ptr.vmem [resolvable:$true] %s274
      %277 = dma.vmem_to_hbm [thread:$0]  %s275, 128, %s5, [#allocation3]
    $region25: #{tpu_custom_call.1} parent=1 // pred_fallthru
      _
    // Predicated region
    $region26: #{tpu_custom_call.1} parent=1 // pred_check
      _
    $region27: #{tpu_custom_call.1} parent=1 // pred_check_branch
      %279 = sbr.rel (0) target = $region29
    $region28: #{tpu_custom_call.1} parent=1 // pred_region
      %280 = dma.done [#allocation3], 128
    $region29: #{tpu_custom_call.1} parent=1 // pred_fallthru
      _
    %281 = vsyncpa [#allocation3], 1

</llo_original>
